<compile_context>
chip_gen: v7x
topology: tpu7x:2x2x1
jax: 0.10.0
libtpu: 0.0.40
codegen_flags: <defaults>
</compile_context>

<pallas_src>
import functools

import jax
import jax.numpy as jnp
from jax.experimental import pallas as pl
from jax.experimental.pallas import tpu as pltpu

LANE = 128     # channel dims are zero-padded to a multiple of this (dense lanes, full vst)
_SUB = 16      # time-tile / history-row granularity (bf16 sublane-pair friendly)

_VMEM_LIMIT_CACHE = None


def _round_up(x, m):
    return ((x + m - 1) // m) * m


def _cpad(c):
    """Pad a channel count up to a multiple of 128 lanes (min 128)."""
    return max(LANE, _round_up(c, LANE))


def _vmem_limit():
    """Generation-aware scoped-VMEM limit: ~3/4 of physical, capped at 96 MiB."""
    global _VMEM_LIMIT_CACHE
    if _VMEM_LIMIT_CACHE is None:
        try:
            cap = int(pltpu.get_tpu_info().vmem_capacity_bytes)
        except Exception:
            cap = 64 * 1024 * 1024          # conservative fallback (v7x-sized VMEM)
        _VMEM_LIMIT_CACHE = min((cap * 3) // 4, 96 * 1024 * 1024)
    return _VMEM_LIMIT_CACHE


def _choose_t_tile(T, cinp, coutp, out_c, K, d, out_bytes):
    """Largest time tile (multiple of 16, capped at 2048) fitting the VMEM budget.

    Counts double-buffered bf16 weights/biases, the history rows of the window
    scratch, and per-row activation traffic (bf16 blocks + f32 temporaries).
    """
    budget = int(_vmem_limit() * 0.6)       # headroom for compiler scratch / pipeline
    pad_r = _round_up(max((K - 1) * d, 1), _SUB)
    w_elems = K * cinp * coutp + K * coutp * coutp + cinp * coutp + coutp * out_c
    fixed = 2 * 2 * w_elems                 # double-buffered bf16 weights
    fixed += 2 * 4 * (3 * coutp + out_c)    # double-buffered f32 biases
    fixed += 2 * pad_r * (cinp + coutp)     # history rows of the bf16 window scratch
    per_row = (2 * 2 * cinp                 # double-buffered bf16 x block
               + 2 * out_bytes * out_c      # double-buffered output block
               + 2 * (cinp + coutp)         # xw / hw window scratch body (bf16)
               + 4 * (2 * coutp + out_c))   # live f32 temporaries (h1 / h2 / res)
    tt = max((budget - fixed) // max(per_row, 1), _SUB)
    tt = min(tt, 2048)
    if tt >= T:
        return T
    return max(_SUB, (tt // _SUB) * _SUB)


# ----------------------------------------------------------------------------
# Fused TemporalBlock kernel (optionally with the final Linear fused in).
#   x_ref : (1, Tt, Cinp)   bf16 current time tile of the input activation
#   w1_ref: (K, Cinp, Coutp) bf16 conv1 weights    b1_ref: (1, Coutp) f32
#   w2_ref: (K, Coutp, Coutp) bf16 conv2 weights   b2_ref: (1, Coutp) f32
#   [wd_ref: (Cinp, Coutp) bf16, bd_ref: (1, Coutp) f32]   optional 1x1 downsample
#   [wl_ref: (Coutp, Outp) bf16, bl_ref: (1, Outp) f32]    optional fused final Linear
#   o_ref : (1, Tt, Coutp|Outp)
#   xw_ref: (pad_r + Tt, Cinp)  bf16 VMEM window: [history | current x tile]
#   hw_ref: (pad_r + Tt, Coutp) bf16 VMEM window: [history | current h1 tile]
# Grid = (B, num_T_tiles).  The T axis carries the causal history and therefore MUST
# stay innermost and sequential ("arbitrary"); the B axis is "parallel" (megacore/v7x).
# ----------------------------------------------------------------------------
def _temporal_block_kernel(x_ref, w1_ref, b1_ref, w2_ref, b2_ref, *rest,
                           K, d, t_tile, pad_r, downsample, final):
    idx = 0
    if downsample:
        wd_ref, bd_ref = rest[0], rest[1]
        idx = 2
    if final:
        wl_ref, bl_ref = rest[idx], rest[idx + 1]
        idx += 2
    o_ref, xw_ref, hw_ref = rest[idx], rest[idx + 1], rest[idx + 2]

    pad = (K - 1) * d
    off = pad_r - pad                        # static; tap k reads rows [off + k*d, +Tt)

    # New batch element / first time tile: causal history is zeros.
    @pl.when(pl.program_id(1) == 0)
    def _():
        xw_ref[...] = jnp.zeros_like(xw_ref)
        hw_ref[...] = jnp.zeros_like(hw_ref)

    x = x_ref[0]                                             # (Tt, Cinp) bf16
    xw_ref[pl.ds(pad_r, t_tile), :] = x                      # sublane-aligned store

    # ---- conv1 (causal, dilated) + ReLU: K accumulating bf16 MXU dots -------
    h1 = None
    for k in range(K):
        xk = xw_ref[pl.ds(off + k * d, t_tile), :]
        p = jnp.dot(xk, w1_ref[k], preferred_element_type=jnp.float32)
        h1 = p if h1 is None else h1 + p
    h1 = jnp.maximum(h1 + b1_ref[...], 0.0)                  # relu1 (dropout = identity)

    hw_ref[pl.ds(pad_r, t_tile), :] = h1.astype(hw_ref.dtype)

    # ---- conv2 (causal, dilated) + ReLU --------------------------------------
    h2 = None
    for k in range(K):
        hk = hw_ref[pl.ds(off + k * d, t_tile), :]
        p = jnp.dot(hk, w2_ref[k], preferred_element_type=jnp.float32)
        h2 = p if h2 is None else h2 + p
    h2 = jnp.maximum(h2 + b2_ref[...], 0.0)                  # relu2

    # ---- residual branch (reuses the x tile already in VMEM) ----------------
    if downsample:
        res = jnp.dot(x, wd_ref[...], preferred_element_type=jnp.float32) + bd_ref[...]
    else:
        res = x.astype(jnp.float32)        # identity: padded cin == padded cout

    out = jnp.maximum(h2 + res, 0.0)       # outer ReLU

    # ---- fused final Linear (last block only) --------------------------------
    if final:
        out = (jnp.dot(out.astype(jnp.bfloat16), wl_ref[...],
                       preferred_element_type=jnp.float32) + bl_ref[...])

    o_ref[0] = out.astype(o_ref.dtype)

    # Carry the last pad_r window rows forward to the next time tile.
    # (A ragged last tile may carry junk rows, but they are never consumed: the
    #  next grid step is t==0 of the next batch element, which resets the history.)
    @pl.when(pl.program_id(1) + 1 < pl.num_programs(1))
    def _():
        x_tail = xw_ref[pl.ds(t_tile, pad_r), :]
        h_tail = hw_ref[pl.ds(t_tile, pad_r), :]
        xw_ref[pl.ds(0, pad_r), :] = x_tail
        hw_ref[pl.ds(0, pad_r), :] = h_tail


def run_temporal_block(x, w1, b1, w2, b2, wd, bd, wl, bl, *, K, d, t_tile, out_dtype):
    B, T, cinp = x.shape
    coutp = w1.shape[-1]
    pad = (K - 1) * d
    pad_r = _round_up(max(pad, 1), _SUB)
    n_t = pl.cdiv(T, t_tile)
    downsample = wd is not None
    final = wl is not None
    out_c = wl.shape[-1] if final else coutp
    if not downsample:
        assert cinp == coutp, "identity residual needs matching padded channel counts"

    in_specs = [
        pl.BlockSpec((1, t_tile, cinp), lambda b, t: (b, t, 0)),
        pl.BlockSpec(w1.shape, lambda b, t: (0, 0, 0)),
        pl.BlockSpec(b1.shape, lambda b, t: (0, 0)),
        pl.BlockSpec(w2.shape, lambda b, t: (0, 0, 0)),
        pl.BlockSpec(b2.shape, lambda b, t: (0, 0)),
    ]
    inputs = [x, w1, b1, w2, b2]
    if downsample:
        in_specs += [pl.BlockSpec(wd.shape, lambda b, t: (0, 0)),
                     pl.BlockSpec(bd.shape, lambda b, t: (0, 0))]
        inputs += [wd, bd]
    if final:
        in_specs += [pl.BlockSpec(wl.shape, lambda b, t: (0, 0)),
                     pl.BlockSpec(bl.shape, lambda b, t: (0, 0))]
        inputs += [wl, bl]

    return pl.pallas_call(
        functools.partial(_temporal_block_kernel, K=K, d=d, t_tile=t_tile,
                          pad_r=pad_r, downsample=downsample, final=final),
        out_shape=jax.ShapeDtypeStruct((B, T, out_c), out_dtype),
        grid=(B, n_t),
        in_specs=in_specs,
        out_specs=pl.BlockSpec((1, t_tile, out_c), lambda b, t: (b, t, 0)),
        scratch_shapes=[pltpu.VMEM((pad_r + t_tile, cinp), jnp.bfloat16),
                        pltpu.VMEM((pad_r + t_tile, coutp), jnp.bfloat16)],
        compiler_params=pltpu.CompilerParams(
            dimension_semantics=("parallel", "arbitrary"),
            vmem_limit_bytes=_vmem_limit()),
    )(*inputs)


# ----------------------------------------------------------------------------
# Parameter init (synthetic, deterministic) in logical (unpadded) layout.
# ----------------------------------------------------------------------------
def init_tcn_params(key, input_size, num_channels, kernel_size, output_size,
                    scale=0.3):
    blocks = []
    in_c = input_size
    for i, out_c in enumerate(num_channels):
        key, k1, k2, k3, k4, k5, k6 = jax.random.split(key, 7)
        blk = {
            "dilation": 2 ** i,
            "in_c": in_c, "out_c": out_c,
            "w1": scale * jax.random.normal(k1, (kernel_size, in_c, out_c), jnp.float32),
            "b1": scale * jax.random.normal(k2, (out_c,), jnp.float32),
            "w2": scale * jax.random.normal(k3, (kernel_size, out_c, out_c), jnp.float32),
            "b2": scale * jax.random.normal(k4, (out_c,), jnp.float32),
            "wd": (scale * jax.random.normal(k5, (in_c, out_c), jnp.float32)
                   if in_c != out_c else None),
            "bd": (scale * jax.random.normal(k6, (out_c,), jnp.float32)
                   if in_c != out_c else None),
        }
        blocks.append(blk)
        in_c = out_c
    key, kl1, kl2 = jax.random.split(key, 3)
    wl = scale * jax.random.normal(kl1, (in_c, output_size), jnp.float32)
    bl = scale * jax.random.normal(kl2, (output_size,), jnp.float32)
    return blocks, wl, bl


# ----------------------------------------------------------------------------
# Pack logical params into padded, bf16 layouts the kernels consume.
# Channel dims (including the network input) are zero-padded to multiples of 128;
# padded lanes stay exactly zero through every layer.
# ----------------------------------------------------------------------------
def pack_tcn_params(blocks, wl, bl, input_size, kernel_size, output_size):
    K = kernel_size
    packed = []
    in_eff = _cpad(input_size)               # input is lane-padded outside the kernels
    for blk in blocks:
        in_c, out_c = blk["in_c"], blk["out_c"]
        coutp = _cpad(out_c)

        w1 = jnp.zeros((K, in_eff, coutp), jnp.float32)
        w1 = w1.at[:, :in_c, :out_c].set(blk["w1"]).astype(jnp.bfloat16)
        b1 = jnp.zeros((1, coutp), jnp.float32).at[0, :out_c].set(blk["b1"])

        w2 = jnp.zeros((K, coutp, coutp), jnp.float32)
        w2 = w2.at[:, :out_c, :out_c].set(blk["w2"]).astype(jnp.bfloat16)
        b2 = jnp.zeros((1, coutp), jnp.float32).at[0, :out_c].set(blk["b2"])

        if blk["wd"] is not None:
            wd = (jnp.zeros((in_eff, coutp), jnp.float32)
                  .at[:in_c, :out_c].set(blk["wd"]).astype(jnp.bfloat16))
            bd = jnp.zeros((1, coutp), jnp.float32).at[0, :out_c].set(blk["bd"])
        else:
            wd, bd = None, None

        packed.append(dict(d=blk["dilation"], w1=w1, b1=b1, w2=w2, b2=b2,
                           wd=wd, bd=bd, coutp=coutp))
        in_eff = coutp

    last_c = blocks[-1]["out_c"]
    outp = _cpad(output_size)
    wlp = (jnp.zeros((in_eff, outp), jnp.float32)
           .at[:last_c, :output_size].set(wl).astype(jnp.bfloat16))
    blp = jnp.zeros((1, outp), jnp.float32).at[0, :output_size].set(bl)
    return packed, wlp, blp


# ----------------------------------------------------------------------------
# TCN forward (Pallas).  x: (B, T, input_size) -> (B, T, output_size)
# ----------------------------------------------------------------------------
def tcn_forward(x, packed_blocks, wlp, blp, kernel_size, output_size,
                return_sequences=True, t_tile=None):
    if kernel_size < 2:
        raise ValueError("kernel_size must be >= 2")
    B, T, c_in = x.shape
    K = kernel_size

    # Lane-pad the input once (outside the kernels) and cast to bf16.
    cinp0 = _cpad(c_in)
    h = jnp.zeros((B, T, cinp0), jnp.bfloat16).at[:, :, :c_in].set(
        x.astype(jnp.bfloat16))

    n = len(packed_blocks)
    for i, p in enumerate(packed_blocks):
        final = (i == n - 1)
        cinp = h.shape[-1]
        coutp = p["coutp"]
        out_c = wlp.shape[-1] if final else coutp
        out_dtype = jnp.float32 if final else jnp.bfloat16
        tt = (t_tile if t_tile is not None
              else _choose_t_tile(T, cinp, coutp, out_c, K, p["d"],
                                  4 if final else 2))
        tt = min(tt, T)
        h = run_temporal_block(
            h, p["w1"], p["b1"], p["w2"], p["b2"], p["wd"], p["bd"],
            wlp if final else None, blp if final else None,
            K=K, d=p["d"], t_tile=tt, out_dtype=out_dtype)

    y = h[:, :, :output_size]                  # drop lane padding outside the kernel
    return y if return_sequences else y[:, -1, :]


# ----------------------------------------------------------------------------
# Pure-JAX f32 reference (lax.conv_general_dilated) for correctness checking.
# ----------------------------------------------------------------------------
def _ref_conv(x_btc, w_kio, b, dilation):
    x_ncw = jnp.transpose(x_btc, (0, 2, 1))
    w_oiw = jnp.transpose(w_kio, (2, 1, 0))
    K = w_kio.shape[0]
    pad = (K - 1) * dilation
    out = jax.lax.conv_general_dilated(
        x_ncw, w_oiw, window_strides=(1,), padding=[(pad, 0)],
        rhs_dilation=(dilation,), dimension_numbers=("NCH", "OIH", "NCH"))
    out = out + b[None, :, None]
    return jnp.transpose(out, (0, 2, 1))


def ref_forward(x, blocks, wl, bl):
    h = x.astype(jnp.float32)
    for p in blocks:
        d = p["dilation"]
        h1 = jax.nn.relu(_ref_conv(h, p["w1"], p["b1"], d))
        h2 = jax.nn.relu(_ref_conv(h1, p["w2"], p["b2"], d))
        if p["wd"] is None:
            res = h
        else:
            res = jnp.einsum("btc,co->bto", h, p["wd"]) + p["bd"]
        h = jax.nn.relu(h2 + res)
    return jnp.einsum("btc,co->bto", h, wl) + bl


if __name__ == "__main__":
    def check(B, T, input_size, num_channels, kernel_size, output_size, t_tile):
        key = jax.random.PRNGKey(0)
        key, kx = jax.random.split(key)
        x = jax.random.normal(kx, (B, T, input_size), jnp.float32)
        blocks, wl, bl = init_tcn_params(key, input_size, num_channels,
                                         kernel_size, output_size)
        packed, wlp, blp = pack_tcn_params(blocks, wl, bl, input_size,
                                           kernel_size, output_size)
        y = tcn_forward(x, packed, wlp, blp, kernel_size, output_size,
                        return_sequences=True, t_tile=t_tile)
        y = jax.block_until_ready(y)
        assert y.shape == (B, T, output_size), y.shape
        y_ref = ref_forward(x, blocks, wl, bl)
        err = float(jnp.max(jnp.abs(y.astype(jnp.float32) - y_ref)))
        scale = float(jnp.max(jnp.abs(y_ref))) + 1e-6
        # bf16 MXU inputs + bf16 inter-block activations vs f32 reference.
        assert err <= 5e-2 * scale + 1e-2, (err, scale)

    # Main config (TCN defaults: dropout=0.0, return_sequences=True):
    # batch=2, seq=16, input_size=1, num_channels=(4, 8), kernel_size=2, output_size=1.
    check(B=2, T=16, input_size=1, num_channels=(4, 8), kernel_size=2,
          output_size=1, t_tile=None)

    # Second config: exercises the multi-tile time carry (T=64, T_tile=16),
    # kernel_size=3 (dilations 1/2/4), identity residuals and the downsample path.
    check(B=1, T=64, input_size=4, num_channels=(4, 4, 8), kernel_size=3,
          output_size=3, t_tile=16)

    print("KERNEL_OK")
</pallas_src>

<mosaic_0001>
module attributes {stable_mosaic.version = 11 : i64} {
  func.func @_temporal_block_kernel(%arg0: i32, %arg1: i32, %arg2: memref<1x16x128xbf16, #tpu.memory_space<vmem>>, %arg3: memref<2x128x128xbf16, #tpu.memory_space<vmem>>, %arg4: memref<1x128xf32, #tpu.memory_space<vmem>>, %arg5: memref<2x128x128xbf16, #tpu.memory_space<vmem>>, %arg6: memref<1x128xf32, #tpu.memory_space<vmem>>, %arg7: memref<128x128xbf16, #tpu.memory_space<vmem>>, %arg8: memref<1x128xf32, #tpu.memory_space<vmem>>, %arg9: memref<1x16x128xbf16, #tpu.memory_space<vmem>>, %arg10: memref<32x128xbf16, #tpu.memory_space<vmem>>, %arg11: memref<32x128xbf16, #tpu.memory_space<vmem>>) attributes {dimension_semantics = [#tpu.dimension_semantics<parallel>, #tpu.dimension_semantics<arbitrary>], iteration_bounds = array<i64: 2, 1>, scalar_prefetch = 0 : i64, scratch_operands = 2 : i64, tpu.core_type = #tpu.core_type<tc>, window_params = [{transform_indices = @transform_0, window_bounds = array<i64: 1, 16, 128>}, {pipeline_mode = #tpu.pipeline_mode<synchronous>, transform_indices = @transform_1, window_bounds = array<i64: 2, 128, 128>}, {pipeline_mode = #tpu.pipeline_mode<synchronous>, transform_indices = @transform_2, window_bounds = array<i64: 1, 128>}, {pipeline_mode = #tpu.pipeline_mode<synchronous>, transform_indices = @transform_3, window_bounds = array<i64: 2, 128, 128>}, {pipeline_mode = #tpu.pipeline_mode<synchronous>, transform_indices = @transform_4, window_bounds = array<i64: 1, 128>}, {pipeline_mode = #tpu.pipeline_mode<synchronous>, transform_indices = @transform_5, window_bounds = array<i64: 128, 128>}, {pipeline_mode = #tpu.pipeline_mode<synchronous>, transform_indices = @transform_6, window_bounds = array<i64: 1, 128>}, {transform_indices = @transform_7, window_bounds = array<i64: 1, 16, 128>}]} {
    %c0_i32 = arith.constant 0 : i32
    %0 = arith.cmpi eq, %arg1, %c0_i32 : i32
    %1 = arith.extui %0 : i1 to i32
    %c0_i32_0 = arith.constant 0 : i32
    %2 = arith.cmpi ne, %1, %c0_i32_0 : i32
    scf.if %2 {
      %cst_44 = arith.constant 0.000000e+00 : bf16
      %52 = vector.broadcast %cst_44 : bf16 to vector<32x128xbf16>
      %c0_45 = arith.constant 0 : index
      %c0_46 = arith.constant 0 : index
      %53 = vector.load %arg10[%c0_45, %c0_46] : memref<32x128xbf16, #tpu.memory_space<vmem>>, vector<32x128xbf16>
      tpu.vector_store %arg10[%c0_45, %c0_46], %52 {strides = array<i32>} : memref<32x128xbf16, #tpu.memory_space<vmem>>, vector<32x128xbf16>,
      %cst_47 = arith.constant 0.000000e+00 : bf16
      %54 = vector.broadcast %cst_47 : bf16 to vector<32x128xbf16>
      %c0_48 = arith.constant 0 : index
      %c0_49 = arith.constant 0 : index
      %55 = vector.load %arg11[%c0_48, %c0_49] : memref<32x128xbf16, #tpu.memory_space<vmem>>, vector<32x128xbf16>
      tpu.vector_store %arg11[%c0_48, %c0_49], %54 {strides = array<i32>} : memref<32x128xbf16, #tpu.memory_space<vmem>>, vector<32x128xbf16>,
    } else {
    }
    %c0 = arith.constant 0 : index
    %c0_1 = arith.constant 0 : index
    %c0_2 = arith.constant 0 : index
    %3 = vector.load %arg2[%c0, %c0_1, %c0_2] : memref<1x16x128xbf16, #tpu.memory_space<vmem>>, vector<1x16x128xbf16>
    %4 = vector.shape_cast %3 : vector<1x16x128xbf16> to vector<16x128xbf16>
    %c16 = arith.constant 16 : index
    %c0_3 = arith.constant 0 : index
    %5 = vector.load %arg10[%c16, %c0_3] : memref<32x128xbf16, #tpu.memory_space<vmem>>, vector<16x128xbf16>
    tpu.vector_store %arg10[%c16, %c0_3], %4 {strides = array<i32>} : memref<32x128xbf16, #tpu.memory_space<vmem>>, vector<16x128xbf16>,
    %c15 = arith.constant 15 : index
    %c0_4 = arith.constant 0 : index
    %6 = vector.load %arg10[%c15, %c0_4] : memref<32x128xbf16, #tpu.memory_space<vmem>>, vector<16x128xbf16>
    %c0_5 = arith.constant 0 : index
    %c0_6 = arith.constant 0 : index
    %c0_7 = arith.constant 0 : index
    %7 = vector.load %arg3[%c0_5, %c0_6, %c0_7] : memref<2x128x128xbf16, #tpu.memory_space<vmem>>, vector<1x128x128xbf16>
    %8 = vector.shape_cast %7 : vector<1x128x128xbf16> to vector<128x128xbf16>
    %cst = arith.constant dense<0.000000e+00> : vector<16x128xf32>
    %9 = tpu.matmul %6, %8, %cst {dimension_numbers = #tpu.dot_dimension_numbers<[1], [0], [0], [1], [0, 0, 1, 1], [], []>} : vector<16x128xbf16>, vector<128x128xbf16>, vector<16x128xf32> -> vector<16x128xf32>
    %c16_8 = arith.constant 16 : index
    %c0_9 = arith.constant 0 : index
    %10 = vector.load %arg10[%c16_8, %c0_9] : memref<32x128xbf16, #tpu.memory_space<vmem>>, vector<16x128xbf16>
    %c1 = arith.constant 1 : index
    %c0_10 = arith.constant 0 : index
    %c0_11 = arith.constant 0 : index
    %11 = vector.load %arg3[%c1, %c0_10, %c0_11] : memref<2x128x128xbf16, #tpu.memory_space<vmem>>, vector<1x128x128xbf16>
    %12 = vector.shape_cast %11 : vector<1x128x128xbf16> to vector<128x128xbf16>
    %cst_12 = arith.constant dense<0.000000e+00> : vector<16x128xf32>
    %13 = tpu.matmul %10, %12, %cst_12 {dimension_numbers = #tpu.dot_dimension_numbers<[1], [0], [0], [1], [0, 0, 1, 1], [], []>} : vector<16x128xbf16>, vector<128x128xbf16>, vector<16x128xf32> -> vector<16x128xf32>
    %14 = arith.addf %9, %13 : vector<16x128xf32>
    %c0_13 = arith.constant 0 : index
    %c0_14 = arith.constant 0 : index
    %15 = vector.load %arg4[%c0_13, %c0_14] : memref<1x128xf32, #tpu.memory_space<vmem>>, vector<1x128xf32>
    %16 = vector.broadcast %15 : vector<1x128xf32> to vector<16x128xf32>
    %17 = arith.addf %14, %16 : vector<16x128xf32>
    %cst_15 = arith.constant 0.000000e+00 : f32
    %18 = vector.broadcast %cst_15 : f32 to vector<16x128xf32>
    %19 = arith.maximumf %17, %18 : vector<16x128xf32>
    %20 = arith.truncf %19 : vector<16x128xf32> to vector<16x128xbf16>
    %c16_16 = arith.constant 16 : index
    %c0_17 = arith.constant 0 : index
    %21 = vector.load %arg11[%c16_16, %c0_17] : memref<32x128xbf16, #tpu.memory_space<vmem>>, vector<16x128xbf16>
    tpu.vector_store %arg11[%c16_16, %c0_17], %20 {strides = array<i32>} : memref<32x128xbf16, #tpu.memory_space<vmem>>, vector<16x128xbf16>,
    %c15_18 = arith.constant 15 : index
    %c0_19 = arith.constant 0 : index
    %22 = vector.load %arg11[%c15_18, %c0_19] : memref<32x128xbf16, #tpu.memory_space<vmem>>, vector<16x128xbf16>
    %c0_20 = arith.constant 0 : index
    %c0_21 = arith.constant 0 : index
    %c0_22 = arith.constant 0 : index
    %23 = vector.load %arg5[%c0_20, %c0_21, %c0_22] : memref<2x128x128xbf16, #tpu.memory_space<vmem>>, vector<1x128x128xbf16>
    %24 = vector.shape_cast %23 : vector<1x128x128xbf16> to vector<128x128xbf16>
    %cst_23 = arith.constant dense<0.000000e+00> : vector<16x128xf32>
    %25 = tpu.matmul %22, %24, %cst_23 {dimension_numbers = #tpu.dot_dimension_numbers<[1], [0], [0], [1], [0, 0, 1, 1], [], []>} : vector<16x128xbf16>, vector<128x128xbf16>, vector<16x128xf32> -> vector<16x128xf32>
    %c16_24 = arith.constant 16 : index
    %c0_25 = arith.constant 0 : index
    %26 = vector.load %arg11[%c16_24, %c0_25] : memref<32x128xbf16, #tpu.memory_space<vmem>>, vector<16x128xbf16>
    %c1_26 = arith.constant 1 : index
    %c0_27 = arith.constant 0 : index
    %c0_28 = arith.constant 0 : index
    %27 = vector.load %arg5[%c1_26, %c0_27, %c0_28] : memref<2x128x128xbf16, #tpu.memory_space<vmem>>, vector<1x128x128xbf16>
    %28 = vector.shape_cast %27 : vector<1x128x128xbf16> to vector<128x128xbf16>
    %cst_29 = arith.constant dense<0.000000e+00> : vector<16x128xf32>
    %29 = tpu.matmul %26, %28, %cst_29 {dimension_numbers = #tpu.dot_dimension_numbers<[1], [0], [0], [1], [0, 0, 1, 1], [], []>} : vector<16x128xbf16>, vector<128x128xbf16>, vector<16x128xf32> -> vector<16x128xf32>
    %30 = arith.addf %25, %29 : vector<16x128xf32>
    %c0_30 = arith.constant 0 : index
    %c0_31 = arith.constant 0 : index
    %31 = vector.load %arg6[%c0_30, %c0_31] : memref<1x128xf32, #tpu.memory_space<vmem>>, vector<1x128xf32>
    %32 = vector.broadcast %31 : vector<1x128xf32> to vector<16x128xf32>
    %33 = arith.addf %30, %32 : vector<16x128xf32>
    %cst_32 = arith.constant 0.000000e+00 : f32
    %34 = vector.broadcast %cst_32 : f32 to vector<16x128xf32>
    %35 = arith.maximumf %33, %34 : vector<16x128xf32>
    %c0_33 = arith.constant 0 : index
    %c0_34 = arith.constant 0 : index
    %36 = vector.load %arg7[%c0_33, %c0_34] : memref<128x128xbf16, #tpu.memory_space<vmem>>, vector<128x128xbf16>
    %cst_35 = arith.constant dense<0.000000e+00> : vector<16x128xf32>
    %37 = tpu.matmul %4, %36, %cst_35 {dimension_numbers = #tpu.dot_dimension_numbers<[1], [0], [0], [1], [0, 0, 1, 1], [], []>} : vector<16x128xbf16>, vector<128x128xbf16>, vector<16x128xf32> -> vector<16x128xf32>
    %c0_36 = arith.constant 0 : index
    %c0_37 = arith.constant 0 : index
    %38 = vector.load %arg8[%c0_36, %c0_37] : memref<1x128xf32, #tpu.memory_space<vmem>>, vector<1x128xf32>
    %39 = vector.broadcast %38 : vector<1x128xf32> to vector<16x128xf32>
    %40 = arith.addf %37, %39 : vector<16x128xf32>
    %41 = arith.addf %35, %40 : vector<16x128xf32>
    %cst_38 = arith.constant 0.000000e+00 : f32
    %42 = vector.broadcast %cst_38 : f32 to vector<16x128xf32>
    %43 = arith.maximumf %41, %42 : vector<16x128xf32>
    %44 = arith.truncf %43 : vector<16x128xf32> to vector<16x128xbf16>
    %c0_39 = arith.constant 0 : index
    %c0_40 = arith.constant 0 : index
    %c0_41 = arith.constant 0 : index
    %45 = vector.load %arg9[%c0_39, %c0_40, %c0_41] : memref<1x16x128xbf16, #tpu.memory_space<vmem>>, vector<1x16x128xbf16>
    %46 = vector.shape_cast %45 : vector<1x16x128xbf16> to vector<16x128xbf16>
    %47 = vector.shape_cast %44 : vector<16x128xbf16> to vector<1x16x128xbf16>
    tpu.vector_store %arg9[%c0_39, %c0_40, %c0_41], %47 {strides = array<i32>} : memref<1x16x128xbf16, #tpu.memory_space<vmem>>, vector<1x16x128xbf16>,
    %c1_i32 = arith.constant 1 : i32
    %48 = arith.addi %arg1, %c1_i32 : i32
    %c1_i32_42 = arith.constant 1 : i32
    %49 = arith.cmpi slt, %48, %c1_i32_42 : i32
    %50 = arith.extui %49 : i1 to i32
    %c0_i32_43 = arith.constant 0 : i32
    %51 = arith.cmpi ne, %50, %c0_i32_43 : i32
    scf.if %51 {
      %c16_44 = arith.constant 16 : index
      %c0_45 = arith.constant 0 : index
      %52 = vector.load %arg10[%c16_44, %c0_45] : memref<32x128xbf16, #tpu.memory_space<vmem>>, vector<16x128xbf16>
      %c16_46 = arith.constant 16 : index
      %c0_47 = arith.constant 0 : index
      %53 = vector.load %arg11[%c16_46, %c0_47] : memref<32x128xbf16, #tpu.memory_space<vmem>>, vector<16x128xbf16>
      %c0_48 = arith.constant 0 : index
      %c0_49 = arith.constant 0 : index
      %54 = vector.load %arg10[%c0_48, %c0_49] : memref<32x128xbf16, #tpu.memory_space<vmem>>, vector<16x128xbf16>
      tpu.vector_store %arg10[%c0_48, %c0_49], %52 {strides = array<i32>} : memref<32x128xbf16, #tpu.memory_space<vmem>>, vector<16x128xbf16>,
      %c0_50 = arith.constant 0 : index
      %c0_51 = arith.constant 0 : index
      %55 = vector.load %arg11[%c0_50, %c0_51] : memref<32x128xbf16, #tpu.memory_space<vmem>>, vector<16x128xbf16>
      tpu.vector_store %arg11[%c0_50, %c0_51], %53 {strides = array<i32>} : memref<32x128xbf16, #tpu.memory_space<vmem>>, vector<16x128xbf16>,
    } else {
    }
    return
  }
  func.func @transform_0(%arg0: i32, %arg1: i32) -> (i32, i32, i32) {
    %c0_i32 = arith.constant 0 : i32
    %c0_i32_0 = arith.constant 0 : i32
    return %arg0, %arg1, %c0_i32 : i32, i32, i32
  }
  func.func @transform_1(%arg0: i32, %arg1: i32) -> (i32, i32, i32) {
    %c0_i32 = arith.constant 0 : i32
    %c0_i32_0 = arith.constant 0 : i32
    %c0_i32_1 = arith.constant 0 : i32
    %c0_i32_2 = arith.constant 0 : i32
    return %c0_i32, %c0_i32_0, %c0_i32_1 : i32, i32, i32
  }
  func.func @transform_2(%arg0: i32, %arg1: i32) -> (i32, i32) {
    %c0_i32 = arith.constant 0 : i32
    %c0_i32_0 = arith.constant 0 : i32
    %c0_i32_1 = arith.constant 0 : i32
    return %c0_i32, %c0_i32_0 : i32, i32
  }
  func.func @transform_3(%arg0: i32, %arg1: i32) -> (i32, i32, i32) {
    %c0_i32 = arith.constant 0 : i32
    %c0_i32_0 = arith.constant 0 : i32
    %c0_i32_1 = arith.constant 0 : i32
    %c0_i32_2 = arith.constant 0 : i32
    return %c0_i32, %c0_i32_0, %c0_i32_1 : i32, i32, i32
  }
  func.func @transform_4(%arg0: i32, %arg1: i32) -> (i32, i32) {
    %c0_i32 = arith.constant 0 : i32
    %c0_i32_0 = arith.constant 0 : i32
    %c0_i32_1 = arith.constant 0 : i32
    return %c0_i32, %c0_i32_0 : i32, i32
  }
  func.func @transform_5(%arg0: i32, %arg1: i32) -> (i32, i32) {
    %c0_i32 = arith.constant 0 : i32
    %c0_i32_0 = arith.constant 0 : i32
    %c0_i32_1 = arith.constant 0 : i32
    return %c0_i32, %c0_i32_0 : i32, i32
  }
  func.func @transform_6(%arg0: i32, %arg1: i32) -> (i32, i32) {
    %c0_i32 = arith.constant 0 : i32
    %c0_i32_0 = arith.constant 0 : i32
    %c0_i32_1 = arith.constant 0 : i32
    return %c0_i32, %c0_i32_0 : i32, i32
  }
  func.func @transform_7(%arg0: i32, %arg1: i32) -> (i32, i32, i32) {
    %c0_i32 = arith.constant 0 : i32
    %c0_i32_0 = arith.constant 0 : i32
    return %arg0, %arg1, %c0_i32 : i32, i32, i32
  }
}

</mosaic_0001>

<llo_original>
// kernel: tpu_custom_call.1
$region0: #{tpu_custom_call.1}
  #allocation0 [shape = 'u32[]', space=smem, size = 0x4, offset = 0x4, fixed_abs, tag = 'smem constant byte address 0x4 - core index']
  #allocation1 [shape = 'u32[144,128]{1,0:T(1,128)}', space=vmem, size = 0x12000, scoped, tag = 'internal scratch']
  #allocation2 [shape = 'bf16[32,128]{1,0:T(16,128)(2,1)}', space=vmem, size = 0x2000, scoped, tag = 'scratch operand']
  #allocation3 [shape = 'bf16[32,128]{1,0:T(16,128)(2,1)}', space=vmem, size = 0x2000, scoped, tag = 'scratch operand']
  %s0 = inlined_call_operand.hbm [shape: bf16[2,16,128], index: 0, kind: input, shape index: {}]
  %s1 = inlined_call_operand.hbm [shape: bf16[2,128,128], index: 1, kind: input, shape index: {}]
  %s2 = inlined_call_operand.vmem [shape: f32[1,128], index: 2, kind: input, shape index: {}]
  %s3 = inlined_call_operand.hbm [shape: bf16[2,128,128], index: 3, kind: input, shape index: {}]
  %s4 = inlined_call_operand.vmem [shape: f32[1,128], index: 4, kind: input, shape index: {}]
  %s5 = inlined_call_operand.hbm [shape: bf16[128,128], index: 5, kind: input, shape index: {}]
  %s6 = inlined_call_operand.vmem [shape: f32[1,128], index: 6, kind: input, shape index: {}]
  %s7 = inlined_call_operand.hbm [shape: bf16[2,16,128], index: 7, kind: output, shape index: {}]
  %s8 = sld [smem:[#allocation0]]
  $region85: #{tpu_custom_call.1} parent=0
    _
  %s10 = ssub.s32 1, %s8
  %s11 = scalar_select 0, %s10, %s8
  $region1: #{tpu_custom_call.1} parent=0
    #allocation4 [shape = 'u8[8192]{0}', space=vmem, size = 0x2000, scoped, tag = 'input window, operand 0']
    #allocation5 [shape = 's32[2]{0}', space=sflag, size = 0x8, scoped, tag = 'scoped memory for tpu_custom_call.1']
    #allocation6 [shape = 's32[2]{0}', space=sflag, size = 0x8, scoped, tag = 'scoped memory for tpu_custom_call.1']
    #allocation7 [shape = 'u8[65536]{0}', space=vmem, size = 0x10000, scoped, tag = 'input window, operand 1, single buffered']
    #allocation8 [shape = 's32[1]{0}', space=sflag, size = 0x4, scoped, tag = 'scoped memory for tpu_custom_call.1']
    #allocation9 [shape = 'u8[65536]{0}', space=vmem, size = 0x10000, scoped, tag = 'input window, operand 3, single buffered']
    #allocation10 [shape = 'u8[32768]{0}', space=vmem, size = 0x8000, scoped, tag = 'input window, operand 5, single buffered']
    #allocation11 [shape = 's32[1]{0}', space=sflag, size = 0x4, scoped, tag = 'scoped memory for tpu_custom_call.1']
    #allocation12 [shape = 'u8[8192]{0}', space=vmem, size = 0x2000, scoped, tag = 'output window, operand 0']
    %12 = vsyncpa [#allocation5], 0
    %s13 = scalar_lea.sflag [#allocation5], 1
    %14 = vsyncpa %s13, 0
    %15 = vsyncpa [#allocation8], 0
    %16 = vsyncpa [#allocation11], 0
    %17 = vsyncpa [#allocation6], 0
    %s18 = scalar_lea.sflag [#allocation6], 1
    %19 = vsyncpa %s18, 0
    loop: start=0, step=1, limit=4
    $region2: #{tpu_custom_call.1} parent=1 // loop_pre_header
      _
    $region3: #{tpu_custom_call.1} parent=1 // loop_header
      %s21 = sphi 0, %s25
      %p22 = scmp.ge.s32.totalorder %s21, 4
      %s28 = sphi 0, %s40
      %s29 = sphi 0, %s36
      %s30 = sphi 0, %s28
      %s31 = sphi 0, %s29
      %s32 = sphi 0, %s30
      %s33 = sphi 0, %s31
      %s45 = sphi 0, %s47
      %s48 = sphi 0, %s45
      %s49 = sphi 0, %s48
      %s65 = sphi 0, %s49
      %s69 = sphi 0, %s69
      %s71 = sphi 0, %s69
      %s72 = sphi 0, %s71
      %s86 = sphi 0, %s72
      %s90 = sphi 0, %s90
      %s92 = sphi 0, %s90
      %s93 = sphi 0, %s92
      %s107 = sphi 0, %s93
      %s111 = sphi 0, %s111
      %s113 = sphi 0, %s111
      %s114 = sphi 0, %s113
      %s128 = sphi 0, %s114
      %s132 = sphi 0, %s132
      %s134 = sphi 0, %s132
      %s135 = sphi 0, %s134
      %s149 = sphi 0, %s135
      %s153 = sphi 0, %s153
      %s155 = sphi 0, %s153
      %s156 = sphi 0, %s155
      %s170 = sphi 0, %s156
      %s174 = sphi 0, %s174
      %s176 = sphi 0, %s174
      %s177 = sphi 0, %s176
      %s191 = sphi 0, %s177
      %s199 = sphi 0, %s201
      %s202 = sphi 0, %s199
      %s203 = sphi 0, %s202
      %s219 = sphi 0, %s203
    $region4: #{tpu_custom_call.1} parent=1 // loop_header_branch
      %24 = sbr.rel (%p22) target = $region8
    $region5: #{tpu_custom_call.1} parent=1 // loop_body
      %s26 = ssub.s32 %s21, 1
      %s27 = ssub.s32 %s21, 2
      %s34 = sadd.s32 1, %s29
      %p35 = scmp.ge.s32.totalorder %s34, 1
      %s36 = scalar_select %p35, 0, %s34
      %s37 = sadd.s32 1, %s28
      %s38 = scalar_select %p35, %s37, %s28
      %p39 = scmp.ge.s32.totalorder %s38, 2
      %s40 = scalar_select %p39, 0, %s38
      %s41 = ssub.s32 %s28, %s40
      %s42 = ssub.s32 %s29, %s36
      %s43 = sor.u32 %s41, %s42
      %p44 = scmp.eq.s32.totalorder %s43, 0
      %s46 = sadd.s32 %s45, 1
      %s47 = scalar_select %p44, %s45, %s46
      %p50 = pneg %p44
      %p51 = scmp.eq.s32.totalorder %s21, 1
      %p52 = por %p50, %p51
      %p53 = scmp.ne.s32.totalorder %s45, %s48
      %p54 = scmp.eq.s32.totalorder %s21, 0
      %p55 = por %p53, %p54
      %p56 = scmp.ne.s32.totalorder %s45, %s48
      %p57 = scmp.eq.s32.totalorder %s26, 1
      %p58 = por %p56, %p57
      %p59 = scmp.ne.s32.totalorder %s48, %s49
      %p60 = scmp.eq.s32.totalorder %s26, 0
      %p61 = por %p59, %p60
      %p62 = scmp.ne.s32.totalorder %s48, %s49
      %p63 = scmp.eq.s32.totalorder %s27, 1
      %p64 = por %p62, %p63
      %p66 = scmp.ne.s32.totalorder %s49, %s65
      %p67 = scmp.eq.s32.totalorder %s27, 0
      %p68 = por %p66, %p67
      %s70 = sadd.s32 %s69, 1
      %p73 = scmp.eq.s32.totalorder %s21, 1
      %p74 = scmp.ne.s32.totalorder %s69, %s71
      %p75 = scmp.eq.s32.totalorder %s21, 0
      %p76 = por %p74, %p75
      %p77 = scmp.ne.s32.totalorder %s69, %s71
      %p78 = scmp.eq.s32.totalorder %s26, 1
      %p79 = por %p77, %p78
      %p80 = scmp.ne.s32.totalorder %s71, %s72
      %p81 = scmp.eq.s32.totalorder %s26, 0
      %p82 = por %p80, %p81
      %p83 = scmp.ne.s32.totalorder %s71, %s72
      %p84 = scmp.eq.s32.totalorder %s27, 1
      %p85 = por %p83, %p84
      %p87 = scmp.ne.s32.totalorder %s72, %s86
      %p88 = scmp.eq.s32.totalorder %s27, 0
      %p89 = por %p87, %p88
      %s91 = sadd.s32 %s90, 1
      %p94 = scmp.eq.s32.totalorder %s21, 1
      %p95 = scmp.ne.s32.totalorder %s90, %s92
      %p96 = scmp.eq.s32.totalorder %s21, 0
      %p97 = por %p95, %p96
      %p98 = scmp.ne.s32.totalorder %s90, %s92
      %p99 = scmp.eq.s32.totalorder %s26, 1
      %p100 = por %p98, %p99
      %p101 = scmp.ne.s32.totalorder %s92, %s93
      %p102 = scmp.eq.s32.totalorder %s26, 0
      %p103 = por %p101, %p102
      %p104 = scmp.ne.s32.totalorder %s92, %s93
      %p105 = scmp.eq.s32.totalorder %s27, 1
      %p106 = por %p104, %p105
      %p108 = scmp.ne.s32.totalorder %s93, %s107
      %p109 = scmp.eq.s32.totalorder %s27, 0
      %p110 = por %p108, %p109
      %s112 = sadd.s32 %s111, 1
      %p115 = scmp.eq.s32.totalorder %s21, 1
      %p116 = scmp.ne.s32.totalorder %s111, %s113
      %p117 = scmp.eq.s32.totalorder %s21, 0
      %p118 = por %p116, %p117
      %p119 = scmp.ne.s32.totalorder %s111, %s113
      %p120 = scmp.eq.s32.totalorder %s26, 1
      %p121 = por %p119, %p120
      %p122 = scmp.ne.s32.totalorder %s113, %s114
      %p123 = scmp.eq.s32.totalorder %s26, 0
      %p124 = por %p122, %p123
      %p125 = scmp.ne.s32.totalorder %s113, %s114
      %p126 = scmp.eq.s32.totalorder %s27, 1
      %p127 = por %p125, %p126
      %p129 = scmp.ne.s32.totalorder %s114, %s128
      %p130 = scmp.eq.s32.totalorder %s27, 0
      %p131 = por %p129, %p130
      %s133 = sadd.s32 %s132, 1
      %p136 = scmp.eq.s32.totalorder %s21, 1
      %p137 = scmp.ne.s32.totalorder %s132, %s134
      %p138 = scmp.eq.s32.totalorder %s21, 0
      %p139 = por %p137, %p138
      %p140 = scmp.ne.s32.totalorder %s132, %s134
      %p141 = scmp.eq.s32.totalorder %s26, 1
      %p142 = por %p140, %p141
      %p143 = scmp.ne.s32.totalorder %s134, %s135
      %p144 = scmp.eq.s32.totalorder %s26, 0
      %p145 = por %p143, %p144
      %p146 = scmp.ne.s32.totalorder %s134, %s135
      %p147 = scmp.eq.s32.totalorder %s27, 1
      %p148 = por %p146, %p147
      %p150 = scmp.ne.s32.totalorder %s135, %s149
      %p151 = scmp.eq.s32.totalorder %s27, 0
      %p152 = por %p150, %p151
      %s154 = sadd.s32 %s153, 1
      %p157 = scmp.eq.s32.totalorder %s21, 1
      %p158 = scmp.ne.s32.totalorder %s153, %s155
      %p159 = scmp.eq.s32.totalorder %s21, 0
      %p160 = por %p158, %p159
      %p161 = scmp.ne.s32.totalorder %s153, %s155
      %p162 = scmp.eq.s32.totalorder %s26, 1
      %p163 = por %p161, %p162
      %p164 = scmp.ne.s32.totalorder %s155, %s156
      %p165 = scmp.eq.s32.totalorder %s26, 0
      %p166 = por %p164, %p165
      %p167 = scmp.ne.s32.totalorder %s155, %s156
      %p168 = scmp.eq.s32.totalorder %s27, 1
      %p169 = por %p167, %p168
      %p171 = scmp.ne.s32.totalorder %s156, %s170
      %p172 = scmp.eq.s32.totalorder %s27, 0
      %p173 = por %p171, %p172
      %s175 = sadd.s32 %s174, 1
      %p178 = scmp.eq.s32.totalorder %s21, 1
      %p179 = scmp.ne.s32.totalorder %s174, %s176
      %p180 = scmp.eq.s32.totalorder %s21, 0
      %p181 = por %p179, %p180
      %p182 = scmp.ne.s32.totalorder %s174, %s176
      %p183 = scmp.eq.s32.totalorder %s26, 1
      %p184 = por %p182, %p183
      %p185 = scmp.ne.s32.totalorder %s176, %s177
      %p186 = scmp.eq.s32.totalorder %s26, 0
      %p187 = por %p185, %p186
      %p188 = scmp.ne.s32.totalorder %s176, %s177
      %p189 = scmp.eq.s32.totalorder %s27, 1
      %p190 = por %p188, %p189
      %p192 = scmp.ne.s32.totalorder %s177, %s191
      %p193 = scmp.eq.s32.totalorder %s27, 0
      %p194 = por %p192, %p193
      %s195 = ssub.s32 %s28, %s40
      %s196 = ssub.s32 %s29, %s36
      %s197 = sor.u32 %s195, %s196
      %p198 = scmp.eq.s32.totalorder %s197, 0
      %s200 = sadd.s32 %s199, 1
      %s201 = scalar_select %p198, %s199, %s200
      %p204 = pneg %p198
      %p205 = scmp.eq.s32.totalorder %s21, 1
      %p206 = por %p204, %p205
      %p207 = scmp.ne.s32.totalorder %s199, %s202
      %p208 = scmp.eq.s32.totalorder %s21, 0
      %p209 = por %p207, %p208
      %p210 = scmp.ne.s32.totalorder %s199, %s202
      %p211 = scmp.eq.s32.totalorder %s26, 1
      %p212 = por %p210, %p211
      %p213 = scmp.ne.s32.totalorder %s202, %s203
      %p214 = scmp.eq.s32.totalorder %s26, 0
      %p215 = por %p213, %p214
      %p216 = scmp.ne.s32.totalorder %s202, %s203
      %p217 = scmp.eq.s32.totalorder %s27, 1
      %p218 = por %p216, %p217
      %p220 = scmp.ne.s32.totalorder %s203, %s219
      %p221 = scmp.eq.s32.totalorder %s27, 0
      %p222 = por %p220, %p221
      %p223 = scmp.le.s32.totalorder 1, %s21
      %p224 = scmp.lt.s32.totalorder %s21, 3
      %p225 = pnand %p223, %p224
      %p226 = pneg %p225
      // Predicated region
      $region9: #{tpu_custom_call.1} parent=5 // pred_check
        _
      $region10: #{tpu_custom_call.1} parent=5 // pred_check_branch
        %228 = sbr.rel (%p225) target = $region12
      $region11: #{tpu_custom_call.1} parent=5 // pred_region
        %s229 = ssub.s32 %s21, 1
        // Predicated region
        $region13: #{tpu_custom_call.1} parent=11 // pred_check
          %p230 = pneg %p82
        $region14: #{tpu_custom_call.1} parent=11 // pred_check_branch
          %232 = sbr.rel (%p230) target = $region16
        $region15: #{tpu_custom_call.1} parent=11 // pred_region
          %s234 = ssub.s32 2048, 2048
          %235 = vsyncadd [#allocation8], %s234
          %s236 = sshll.u32 [#allocation7], 4
          %s237 = int_to_ptr.vmem [resolvable:$true] %s236
          %242 = dma.hbm_to_vmem [thread:$0]  %s1, 2048, %s237, [#allocation8], 64, 64, 4
        $region16: #{tpu_custom_call.1} parent=11 // pred_fallthru
          _
        // Predicated region
        $region17: #{tpu_custom_call.1} parent=11 // pred_check
          %p243 = pneg %p103
        $region18: #{tpu_custom_call.1} parent=11 // pred_check_branch
          %245 = sbr.rel (%p243) target = $region20
        $region19: #{tpu_custom_call.1} parent=11 // pred_region
          _
        $region20: #{tpu_custom_call.1} parent=11 // pred_fallthru
          _
        // Predicated region
        $region21: #{tpu_custom_call.1} parent=11 // pred_check
          %p246 = pneg %p124
        $region22: #{tpu_custom_call.1} parent=11 // pred_check_branch
          %248 = sbr.rel (%p246) target = $region24
        $region23: #{tpu_custom_call.1} parent=11 // pred_region
          %s250 = ssub.s32 2048, 2048
          %251 = vsyncadd [#allocation8], %s250
          %s252 = sshll.u32 [#allocation9], 4
          %s253 = int_to_ptr.vmem [resolvable:$true] %s252
          %258 = dma.hbm_to_vmem [thread:$0]  %s3, 2048, %s253, [#allocation8], 64, 64, 4
        $region24: #{tpu_custom_call.1} parent=11 // pred_fallthru
          _
        // Predicated region
        $region25: #{tpu_custom_call.1} parent=11 // pred_check
          %p259 = pneg %p145
        $region26: #{tpu_custom_call.1} parent=11 // pred_check_branch
          %261 = sbr.rel (%p259) target = $region28
        $region27: #{tpu_custom_call.1} parent=11 // pred_region
          _
        $region28: #{tpu_custom_call.1} parent=11 // pred_fallthru
          _
        // Predicated region
        $region29: #{tpu_custom_call.1} parent=11 // pred_check
          %p262 = pneg %p166
        $region30: #{tpu_custom_call.1} parent=11 // pred_check_branch
          %264 = sbr.rel (%p262) target = $region32
        $region31: #{tpu_custom_call.1} parent=11 // pred_region
          %s266 = ssub.s32 1024, 1024
          %267 = vsyncadd [#allocation11], %s266
          %s268 = sshll.u32 [#allocation10], 4
          %s269 = int_to_ptr.vmem [resolvable:$true] %s268
          %274 = dma.hbm_to_vmem [thread:$0]  %s5, 1024, %s269, [#allocation11], 64, 64, 4
        $region32: #{tpu_custom_call.1} parent=11 // pred_fallthru
          _
        // Predicated region
        $region33: #{tpu_custom_call.1} parent=11 // pred_check
          %p275 = pneg %p187
        $region34: #{tpu_custom_call.1} parent=11 // pred_check_branch
          %277 = sbr.rel (%p275) target = $region36
        $region35: #{tpu_custom_call.1} parent=11 // pred_region
          _
        $region36: #{tpu_custom_call.1} parent=11 // pred_fallthru
          _
      $region12: #{tpu_custom_call.1} parent=5 // pred_fallthru
        _
      %p278 = scmp.lt.s32.totalorder %s21, 2
      // Predicated region
      $region37: #{tpu_custom_call.1} parent=5 // pred_check
        %p279 = pneg %p278
      $region38: #{tpu_custom_call.1} parent=5 // pred_check_branch
        %281 = sbr.rel (%p279) target = $region40
      $region39: #{tpu_custom_call.1} parent=5 // pred_region
        // Predicated region
        $region41: #{tpu_custom_call.1} parent=39 // pred_check
          %p282 = pneg %p55
        $region42: #{tpu_custom_call.1} parent=39 // pred_check_branch
          %284 = sbr.rel (%p282) target = $region44
        $region43: #{tpu_custom_call.1} parent=39 // pred_region
          %s285 = sand.u32 %s45, 1
          %s286 = scalar_lea.sflag [#allocation5], %s285
          %s287 = sand.u32 %s45, 1
          %s288 = smul.addr %s287, 8
          %s289 = scalar_lea.vmem [#allocation4], %s288
          %s290 = smul.u32 2, %s29
          %s292 = ssub.s32 128, 128
          %293 = vsyncadd %s286, %s292
          %s294 = smul.addr %s28, 2
          %s295 = sadd.s32 %s290, %s294
          %s296 = smul.addr %s295, 64
          %s297 = scalar_lea.hbm %s0, %s296
          %s298 = sshll.u32 %s289, 4
          %s299 = int_to_ptr.vmem [resolvable:$true] %s298
          %304 = dma.hbm_to_vmem [thread:$0]  %s297, 128, %s299, %s286, 64, 64, 4
        $region44: #{tpu_custom_call.1} parent=39 // pred_fallthru
          _
      $region40: #{tpu_custom_call.1} parent=5 // pred_fallthru
        _
      %p305 = scmp.le.s32.totalorder 1, %s21
      %p306 = scmp.lt.s32.totalorder %s21, 3
      %p307 = pnand %p305, %p306
      %p308 = pneg %p307
      // Predicated region
      $region45: #{tpu_custom_call.1} parent=5 // pred_check
        _
      $region46: #{tpu_custom_call.1} parent=5 // pred_check_branch
        %310 = sbr.rel (%p307) target = $region48
      $region47: #{tpu_custom_call.1} parent=5 // pred_region
        %s311 = ssub.s32 %s21, 1
        %s312 = sand.u32 %s48, 1
        %s313 = scalar_lea.sflag [#allocation5], %s312
        %s314 = sand.u32 %s48, 1
        %s315 = smul.addr %s314, 8
        %s316 = scalar_lea.vmem [#allocation4], %s315
        // Predicated region
        $region49: #{tpu_custom_call.1} parent=47 // pred_check
          %p317 = pneg %p61
        $region50: #{tpu_custom_call.1} parent=47 // pred_check_branch
          %319 = sbr.rel (%p317) target = $region52
        $region51: #{tpu_custom_call.1} parent=47 // pred_region
          %320 = dma.done %s313, 128
        $region52: #{tpu_custom_call.1} parent=47 // pred_fallthru
          _
        // Predicated region
        $region53: #{tpu_custom_call.1} parent=47 // pred_check
          %p321 = pneg %p82
        $region54: #{tpu_custom_call.1} parent=47 // pred_check_branch
          %323 = sbr.rel (%p321) target = $region56
        $region55: #{tpu_custom_call.1} parent=47 // pred_region
          %324 = dma.done [#allocation8], 2048
        $region56: #{tpu_custom_call.1} parent=47 // pred_fallthru
          _
        // Predicated region
        $region57: #{tpu_custom_call.1} parent=47 // pred_check
          %p325 = pneg %p124
        $region58: #{tpu_custom_call.1} parent=47 // pred_check_branch
          %327 = sbr.rel (%p325) target = $region60
        $region59: #{tpu_custom_call.1} parent=47 // pred_region
          %328 = dma.done [#allocation8], 2048
        $region60: #{tpu_custom_call.1} parent=47 // pred_fallthru
          _
        // Predicated region
        $region61: #{tpu_custom_call.1} parent=47 // pred_check
          %p329 = pneg %p166
        $region62: #{tpu_custom_call.1} parent=47 // pred_check_branch
          %331 = sbr.rel (%p329) target = $region64
        $region63: #{tpu_custom_call.1} parent=47 // pred_region
          %332 = dma.done [#allocation11], 1024
        $region64: #{tpu_custom_call.1} parent=47 // pred_fallthru
          _
        %s333 = sand.u32 %s48, 1
        %s334 = scalar_lea.sflag [#allocation5], %s333
        %s335 = sand.u32 %s48, 1
        %s336 = smul.addr %s335, 8
        %s337 = scalar_lea.vmem [#allocation4], %s336
        %p338 = pneg %p61
        %p339 = pneg %p58
        %p340 = pneg %p82
        %p341 = pneg %p79
        %p342 = pneg %p103
        %p343 = pneg %p100
        %p344 = pneg %p124
        %p345 = pneg %p121
        %p346 = pneg %p145
        %p347 = pneg %p142
        %p348 = pneg %p166
        %p349 = pneg %p163
        %p350 = pneg %p187
        %p351 = pneg %p184
        %p352 = pneg %p215
        %p353 = pneg %p212
        %s354 = sand.u32 %s202, 1
        %s355 = scalar_lea.sflag [#allocation6], %s354
        %s356 = sand.u32 %s202, 1
        %s357 = smul.addr %s356, 8
        %s358 = scalar_lea.vmem [#allocation12], %s357
        %s359 = smul.u32 2, %s31
        %s360 = smul.u32 2, %s31
        %p362 = scmp.eq.s32.totalorder %s31, 0
        // Predicated region
        $region65: #{tpu_custom_call.1} parent=47 // pred_check
          %p363 = pneg %p362
        $region66: #{tpu_custom_call.1} parent=47 // pred_check_branch
          %365 = sbr.rel (%p363) target = $region68
        $region67: #{tpu_custom_call.1} parent=47 // pred_region
          %366 = vst [vmem:[#allocation2] sm:$0xff] 0
          %367 = vst [vmem:[#allocation2 + $0x8] sm:$0xff] 0
          %368 = vst [vmem:[#allocation3] sm:$0xff] 0
          %369 = vst [vmem:[#allocation3 + $0x8] sm:$0xff] 0
        $region68: #{tpu_custom_call.1} parent=47 // pred_fallthru
          _
        %v370 = vld [vmem:[%s316] sm:$0xf]
        %v371 = vld [vmem:[%s316 + $0x4] sm:$0xf]
        %v374 = vunpack.c.l.b16 %v370
        %v375 = vunpack.c.l.b16 %v371
        %v376 = vpack.c.b16 %v375, %v374
        %378 = vst [vmem:[#allocation2 + $0x8] sm:$0xff] %v376
        %v379 = vld [vmem:[#allocation2] sm:$0x80]
        %v380 = vld [vmem:[#allocation2 + $0x8] sm:$0xff]
        %v381 = vld [vmem:[#allocation7] sm:$0xf]
        %v382 = vld [vmem:[#allocation7 + $0x4] sm:$0xf]
        %v383 = vld [vmem:[#allocation7 + $0x8] sm:$0xf]
        %v384 = vld [vmem:[#allocation7 + $0xc] sm:$0xf]
        %v385 = vld [vmem:[#allocation7 + $0x10] sm:$0xf]
        %v386 = vld [vmem:[#allocation7 + $0x14] sm:$0xf]
        %v387 = vld [vmem:[#allocation7 + $0x18] sm:$0xf]
        %v388 = vld [vmem:[#allocation7 + $0x1c] sm:$0xf]
        %v389 = vld [vmem:[#allocation7 + $0x20] sm:$0xf]
        %v390 = vld [vmem:[#allocation7 + $0x24] sm:$0xf]
        %v391 = vld [vmem:[#allocation7 + $0x28] sm:$0xf]
        %v392 = vld [vmem:[#allocation7 + $0x2c] sm:$0xf]
        %v393 = vld [vmem:[#allocation7 + $0x30] sm:$0xf]
        %v394 = vld [vmem:[#allocation7 + $0x34] sm:$0xf]
        %v395 = vld [vmem:[#allocation7 + $0x38] sm:$0xf]
        %v396 = vld [vmem:[#allocation7 + $0x3c] sm:$0xf]
        %s397 = scalar_lea.vmem [#allocation7], 64
        %v398 = vld [vmem:[%s397] sm:$0xf]
        %v399 = vld [vmem:[%s397 + $0x4] sm:$0xf]
        %v400 = vld [vmem:[%s397 + $0x8] sm:$0xf]
        %v401 = vld [vmem:[%s397 + $0xc] sm:$0xf]
        %v402 = vld [vmem:[%s397 + $0x10] sm:$0xf]
        %v403 = vld [vmem:[%s397 + $0x14] sm:$0xf]
        %v404 = vld [vmem:[%s397 + $0x18] sm:$0xf]
        %v405 = vld [vmem:[%s397 + $0x1c] sm:$0xf]
        %v406 = vld [vmem:[%s397 + $0x20] sm:$0xf]
        %v407 = vld [vmem:[%s397 + $0x24] sm:$0xf]
        %v408 = vld [vmem:[%s397 + $0x28] sm:$0xf]
        %v409 = vld [vmem:[%s397 + $0x2c] sm:$0xf]
        %v410 = vld [vmem:[%s397 + $0x30] sm:$0xf]
        %v411 = vld [vmem:[%s397 + $0x34] sm:$0xf]
        %v412 = vld [vmem:[%s397 + $0x38] sm:$0xf]
        %v413 = vld [vmem:[%s397 + $0x3c] sm:$0xf]
        %v430 = vunpack.c.l.b16 %v398
        %v431 = vunpack.c.l.b16 %v399
        %v432 = vunpack.c.l.b16 %v400
        %v433 = vunpack.c.l.b16 %v401
        %v434 = vunpack.c.l.b16 %v402
        %v435 = vunpack.c.l.b16 %v403
        %v436 = vunpack.c.l.b16 %v404
        %v437 = vunpack.c.l.b16 %v405
        %v438 = vunpack.c.l.b16 %v406
        %v439 = vunpack.c.l.b16 %v407
        %v440 = vunpack.c.l.b16 %v408
        %v441 = vunpack.c.l.b16 %v409
        %v442 = vunpack.c.l.b16 %v410
        %v443 = vunpack.c.l.b16 %v411
        %v444 = vunpack.c.l.b16 %v412
        %v445 = vunpack.c.l.b16 %v413
        %v446 = vpack.c.b16 %v431, %v430
        %v447 = vpack.c.b16 %v433, %v432
        %v448 = vpack.c.b16 %v435, %v434
        %v449 = vpack.c.b16 %v437, %v436
        %v450 = vpack.c.b16 %v439, %v438
        %v451 = vpack.c.b16 %v441, %v440
        %v452 = vpack.c.b16 %v443, %v442
        %v453 = vpack.c.b16 %v445, %v444
        %462 = vmatprep.subr.bf16.mxu0 0
        %463 = vmatpush1.bf16.msra.mxu0 %v446
        %464 = vmatprep.subr.bf16.mxu0 0
        %465 = vmatpush1.bf16.msra.mxu0 %v447
        %466 = vmatprep.subr.bf16.mxu0 0
        %467 = vmatpush1.bf16.msra.mxu0 %v448
        %468 = vmatprep.subr.bf16.mxu0 0
        %469 = vmatpush1.bf16.msra.mxu0 %v449
        %470 = vmatprep.subr.bf16.mxu0 0
        %471 = vmatpush1.bf16.msra.mxu0 %v450
        %472 = vmatprep.subr.bf16.mxu0 0
        %473 = vmatpush1.bf16.msra.mxu0 %v451
        %474 = vmatprep.subr.bf16.mxu0 0
        %475 = vmatpush1.bf16.msra.mxu0 %v452
        %476 = vmatprep.subr.bf16.mxu0 0
        %477 = vmatpush1.bf16.msra.mxu0 %v453
        %478 = vmatprep.subr.bf16.mxu0 0
        %479 = vmatpush1.bf16.msra.mxu0 0
        %480 = vmatprep.subr.bf16.mxu0 0
        %481 = vmatpush1.bf16.msra.mxu0 0
        %482 = vmatprep.subr.bf16.mxu0 0
        %483 = vmatpush1.bf16.msra.mxu0 0
        %484 = vmatprep.subr.bf16.mxu0 0
        %485 = vmatpush1.bf16.msra.mxu0 0
        %486 = vmatprep.subr.bf16.mxu0 0
        %487 = vmatpush1.bf16.msra.mxu0 0
        %488 = vmatprep.subr.bf16.mxu0 0
        %489 = vmatpush1.bf16.msra.mxu0 0
        %490 = vmatprep.subr.bf16.mxu0 0
        %491 = vmatpush1.bf16.msra.mxu0 0
        %492 = vmatprep.subr.bf16.mxu0 0
        %493 = vmatpush1.bf16.msra.mxu0 0
        %494 = vmatprep.mubr.bf16.mxu0 0
        %495 = vmatmul.mubr.bf16.gmra.mrb[0].mxu0 %v380
        %v496 = vpop.f32.mrb[0].mxu0
        %v497 = vadd.f32 0.0, %v496
        %v498 = vpop.f32.mrb[0].mxu0
        %v499 = vpop.f32.mrb[0].mxu0
        %v500 = vadd.f32 0.0, %v499
        %v501 = vpop.f32.mrb[0].mxu0
        %502 = vdwg.mxu0
        %vm503 = vsmask.f32 256
        %v505 = vshrl.u32 %v379, 16
        %v507 = vrot.slane %v505, 7
        %v509 = vshrl.u32 %v380, 16
        %v511 = vrot.slane %v509, 7
        %v512 = vshll.u32 %v380, 16
        %v514 = vor.u32 %v511, %v512
        %v515 = vsel %vm503, %v507, %v514
        %v533 = vunpack.c.l.b16 %v381
        %v534 = vunpack.c.l.b16 %v382
        %v535 = vunpack.c.l.b16 %v383
        %v536 = vunpack.c.l.b16 %v384
        %v537 = vunpack.c.l.b16 %v385
        %v538 = vunpack.c.l.b16 %v386
        %v539 = vunpack.c.l.b16 %v387
        %v540 = vunpack.c.l.b16 %v388
        %v541 = vunpack.c.l.b16 %v389
        %v542 = vunpack.c.l.b16 %v390
        %v543 = vunpack.c.l.b16 %v391
        %v544 = vunpack.c.l.b16 %v392
        %v545 = vunpack.c.l.b16 %v393
        %v546 = vunpack.c.l.b16 %v394
        %v547 = vunpack.c.l.b16 %v395
        %v548 = vunpack.c.l.b16 %v396
        %v549 = vpack.c.b16 %v534, %v533
        %v550 = vpack.c.b16 %v536, %v535
        %v551 = vpack.c.b16 %v538, %v537
        %v552 = vpack.c.b16 %v540, %v539
        %v553 = vpack.c.b16 %v542, %v541
        %v554 = vpack.c.b16 %v544, %v543
        %v555 = vpack.c.b16 %v546, %v545
        %v556 = vpack.c.b16 %v548, %v547
        %565 = vmatprep.subr.bf16.mxu0 0
        %566 = vmatpush1.bf16.msra.mxu0 %v549
        %567 = vmatprep.subr.bf16.mxu0 0
        %568 = vmatpush1.bf16.msra.mxu0 %v550
        %569 = vmatprep.subr.bf16.mxu0 0
        %570 = vmatpush1.bf16.msra.mxu0 %v551
        %571 = vmatprep.subr.bf16.mxu0 0
        %572 = vmatpush1.bf16.msra.mxu0 %v552
        %573 = vmatprep.subr.bf16.mxu0 0
        %574 = vmatpush1.bf16.msra.mxu0 %v553
        %575 = vmatprep.subr.bf16.mxu0 0
        %576 = vmatpush1.bf16.msra.mxu0 %v554
        %577 = vmatprep.subr.bf16.mxu0 0
        %578 = vmatpush1.bf16.msra.mxu0 %v555
        %579 = vmatprep.subr.bf16.mxu0 0
        %580 = vmatpush1.bf16.msra.mxu0 %v556
        %581 = vmatprep.subr.bf16.mxu0 0
        %582 = vmatpush1.bf16.msra.mxu0 0
        %583 = vmatprep.subr.bf16.mxu0 0
        %584 = vmatpush1.bf16.msra.mxu0 0
        %585 = vmatprep.subr.bf16.mxu0 0
        %586 = vmatpush1.bf16.msra.mxu0 0
        %587 = vmatprep.subr.bf16.mxu0 0
        %588 = vmatpush1.bf16.msra.mxu0 0
        %589 = vmatprep.subr.bf16.mxu0 0
        %590 = vmatpush1.bf16.msra.mxu0 0
        %591 = vmatprep.subr.bf16.mxu0 0
        %592 = vmatpush1.bf16.msra.mxu0 0
        %593 = vmatprep.subr.bf16.mxu0 0
        %594 = vmatpush1.bf16.msra.mxu0 0
        %595 = vmatprep.subr.bf16.mxu0 0
        %596 = vmatpush1.bf16.msra.mxu0 0
        %597 = vmatprep.mubr.bf16.mxu0 0
        %598 = vmatmul.mubr.bf16.gmra.mrb[0].mxu0 %v515
        %v599 = vpop.f32.mrb[0].mxu0
        %v600 = vadd.f32 %v497, %v599
        %v601 = vpop.f32.mrb[0].mxu0
        %v602 = vpop.f32.mrb[0].mxu0
        %v603 = vadd.f32 %v500, %v602
        %v604 = vpop.f32.mrb[0].mxu0
        %605 = vdwg.mxu0
        %v606 = vld [vmem:[%s2] sm:$0x1]
        %v608 = vlaneseq
        %v609 = vshrl.u32 %v608, 7
        %v610 = vsub.s32 0, %v609
        %v611 = vrot.slane %v606, %v610
        %v613 = vadd.f32 %v600, %v611
        %v614 = vadd.f32 %v603, %v611
        %v615 = vmax.f32 %v613, 0.0
        %v616 = vmax.f32 %v614, 0.0
        %v617 = vpack.c.bf16 %v616, %v615
        %618 = vst [vmem:[#allocation3 + $0x8] sm:$0xff] %v617
        %v619 = vld [vmem:[#allocation3] sm:$0x80]
        %v620 = vld [vmem:[#allocation3 + $0x8] sm:$0xff]
        %v621 = vld [vmem:[#allocation9] sm:$0xf]
        %v622 = vld [vmem:[#allocation9 + $0x4] sm:$0xf]
        %v623 = vld [vmem:[#allocation9 + $0x8] sm:$0xf]
        %v624 = vld [vmem:[#allocation9 + $0xc] sm:$0xf]
        %v625 = vld [vmem:[#allocation9 + $0x10] sm:$0xf]
        %v626 = vld [vmem:[#allocation9 + $0x14] sm:$0xf]
        %v627 = vld [vmem:[#allocation9 + $0x18] sm:$0xf]
        %v628 = vld [vmem:[#allocation9 + $0x1c] sm:$0xf]
        %v629 = vld [vmem:[#allocation9 + $0x20] sm:$0xf]
        %v630 = vld [vmem:[#allocation9 + $0x24] sm:$0xf]
        %v631 = vld [vmem:[#allocation9 + $0x28] sm:$0xf]
        %v632 = vld [vmem:[#allocation9 + $0x2c] sm:$0xf]
        %v633 = vld [vmem:[#allocation9 + $0x30] sm:$0xf]
        %v634 = vld [vmem:[#allocation9 + $0x34] sm:$0xf]
        %v635 = vld [vmem:[#allocation9 + $0x38] sm:$0xf]
        %v636 = vld [vmem:[#allocation9 + $0x3c] sm:$0xf]
        %s637 = scalar_lea.vmem [#allocation9], 64
        %v638 = vld [vmem:[%s637] sm:$0xf]
        %v639 = vld [vmem:[%s637 + $0x4] sm:$0xf]
        %v640 = vld [vmem:[%s637 + $0x8] sm:$0xf]
        %v641 = vld [vmem:[%s637 + $0xc] sm:$0xf]
        %v642 = vld [vmem:[%s637 + $0x10] sm:$0xf]
        %v643 = vld [vmem:[%s637 + $0x14] sm:$0xf]
        %v644 = vld [vmem:[%s637 + $0x18] sm:$0xf]
        %v645 = vld [vmem:[%s637 + $0x1c] sm:$0xf]
        %v646 = vld [vmem:[%s637 + $0x20] sm:$0xf]
        %v647 = vld [vmem:[%s637 + $0x24] sm:$0xf]
        %v648 = vld [vmem:[%s637 + $0x28] sm:$0xf]
        %v649 = vld [vmem:[%s637 + $0x2c] sm:$0xf]
        %v650 = vld [vmem:[%s637 + $0x30] sm:$0xf]
        %v651 = vld [vmem:[%s637 + $0x34] sm:$0xf]
        %v652 = vld [vmem:[%s637 + $0x38] sm:$0xf]
        %v653 = vld [vmem:[%s637 + $0x3c] sm:$0xf]
        %v670 = vunpack.c.l.b16 %v638
        %v671 = vunpack.c.l.b16 %v639
        %v672 = vunpack.c.l.b16 %v640
        %v673 = vunpack.c.l.b16 %v641
        %v674 = vunpack.c.l.b16 %v642
        %v675 = vunpack.c.l.b16 %v643
        %v676 = vunpack.c.l.b16 %v644
        %v677 = vunpack.c.l.b16 %v645
        %v678 = vunpack.c.l.b16 %v646
        %v679 = vunpack.c.l.b16 %v647
        %v680 = vunpack.c.l.b16 %v648
        %v681 = vunpack.c.l.b16 %v649
        %v682 = vunpack.c.l.b16 %v650
        %v683 = vunpack.c.l.b16 %v651
        %v684 = vunpack.c.l.b16 %v652
        %v685 = vunpack.c.l.b16 %v653
        %v686 = vpack.c.b16 %v671, %v670
        %v687 = vpack.c.b16 %v673, %v672
        %v688 = vpack.c.b16 %v675, %v674
        %v689 = vpack.c.b16 %v677, %v676
        %v690 = vpack.c.b16 %v679, %v678
        %v691 = vpack.c.b16 %v681, %v680
        %v692 = vpack.c.b16 %v683, %v682
        %v693 = vpack.c.b16 %v685, %v684
        %702 = vmatprep.subr.bf16.mxu0 0
        %703 = vmatpush1.bf16.msra.mxu0 %v686
        %704 = vmatprep.subr.bf16.mxu0 0
        %705 = vmatpush1.bf16.msra.mxu0 %v687
        %706 = vmatprep.subr.bf16.mxu0 0
        %707 = vmatpush1.bf16.msra.mxu0 %v688
        %708 = vmatprep.subr.bf16.mxu0 0
        %709 = vmatpush1.bf16.msra.mxu0 %v689
        %710 = vmatprep.subr.bf16.mxu0 0
        %711 = vmatpush1.bf16.msra.mxu0 %v690
        %712 = vmatprep.subr.bf16.mxu0 0
        %713 = vmatpush1.bf16.msra.mxu0 %v691
        %714 = vmatprep.subr.bf16.mxu0 0
        %715 = vmatpush1.bf16.msra.mxu0 %v692
        %716 = vmatprep.subr.bf16.mxu0 0
        %717 = vmatpush1.bf16.msra.mxu0 %v693
        %718 = vmatprep.subr.bf16.mxu0 0
        %719 = vmatpush1.bf16.msra.mxu0 0
        %720 = vmatprep.subr.bf16.mxu0 0
        %721 = vmatpush1.bf16.msra.mxu0 0
        %722 = vmatprep.subr.bf16.mxu0 0
        %723 = vmatpush1.bf16.msra.mxu0 0
        %724 = vmatprep.subr.bf16.mxu0 0
        %725 = vmatpush1.bf16.msra.mxu0 0
        %726 = vmatprep.subr.bf16.mxu0 0
        %727 = vmatpush1.bf16.msra.mxu0 0
        %728 = vmatprep.subr.bf16.mxu0 0
        %729 = vmatpush1.bf16.msra.mxu0 0
        %730 = vmatprep.subr.bf16.mxu0 0
        %731 = vmatpush1.bf16.msra.mxu0 0
        %732 = vmatprep.subr.bf16.mxu0 0
        %733 = vmatpush1.bf16.msra.mxu0 0
        %734 = vmatprep.mubr.bf16.mxu0 0
        %735 = vmatmul.mubr.bf16.gmra.mrb[0].mxu0 %v620
        %v736 = vpop.f32.mrb[0].mxu0
        %v737 = vadd.f32 0.0, %v736
        %v738 = vpop.f32.mrb[0].mxu0
        %v739 = vpop.f32.mrb[0].mxu0
        %v740 = vadd.f32 0.0, %v739
        %v741 = vpop.f32.mrb[0].mxu0
        %742 = vdwg.mxu0
        %v744 = vshrl.u32 %v619, 16
        %v746 = vrot.slane %v744, 7
        %v748 = vshrl.u32 %v620, 16
        %v750 = vrot.slane %v748, 7
        %v751 = vshll.u32 %v620, 16
        %v753 = vor.u32 %v750, %v751
        %v754 = vsel %vm503, %v746, %v753
        %v772 = vunpack.c.l.b16 %v621
        %v773 = vunpack.c.l.b16 %v622
        %v774 = vunpack.c.l.b16 %v623
        %v775 = vunpack.c.l.b16 %v624
        %v776 = vunpack.c.l.b16 %v625
        %v777 = vunpack.c.l.b16 %v626
        %v778 = vunpack.c.l.b16 %v627
        %v779 = vunpack.c.l.b16 %v628
        %v780 = vunpack.c.l.b16 %v629
        %v781 = vunpack.c.l.b16 %v630
        %v782 = vunpack.c.l.b16 %v631
        %v783 = vunpack.c.l.b16 %v632
        %v784 = vunpack.c.l.b16 %v633
        %v785 = vunpack.c.l.b16 %v634
        %v786 = vunpack.c.l.b16 %v635
        %v787 = vunpack.c.l.b16 %v636
        %v788 = vpack.c.b16 %v773, %v772
        %v789 = vpack.c.b16 %v775, %v774
        %v790 = vpack.c.b16 %v777, %v776
        %v791 = vpack.c.b16 %v779, %v778
        %v792 = vpack.c.b16 %v781, %v780
        %v793 = vpack.c.b16 %v783, %v782
        %v794 = vpack.c.b16 %v785, %v784
        %v795 = vpack.c.b16 %v787, %v786
        %804 = vmatprep.subr.bf16.mxu0 0
        %805 = vmatpush1.bf16.msra.mxu0 %v788
        %806 = vmatprep.subr.bf16.mxu0 0
        %807 = vmatpush1.bf16.msra.mxu0 %v789
        %808 = vmatprep.subr.bf16.mxu0 0
        %809 = vmatpush1.bf16.msra.mxu0 %v790
        %810 = vmatprep.subr.bf16.mxu0 0
        %811 = vmatpush1.bf16.msra.mxu0 %v791
        %812 = vmatprep.subr.bf16.mxu0 0
        %813 = vmatpush1.bf16.msra.mxu0 %v792
        %814 = vmatprep.subr.bf16.mxu0 0
        %815 = vmatpush1.bf16.msra.mxu0 %v793
        %816 = vmatprep.subr.bf16.mxu0 0
        %817 = vmatpush1.bf16.msra.mxu0 %v794
        %818 = vmatprep.subr.bf16.mxu0 0
        %819 = vmatpush1.bf16.msra.mxu0 %v795
        %820 = vmatprep.subr.bf16.mxu0 0
        %821 = vmatpush1.bf16.msra.mxu0 0
        %822 = vmatprep.subr.bf16.mxu0 0
        %823 = vmatpush1.bf16.msra.mxu0 0
        %824 = vmatprep.subr.bf16.mxu0 0
        %825 = vmatpush1.bf16.msra.mxu0 0
        %826 = vmatprep.subr.bf16.mxu0 0
        %827 = vmatpush1.bf16.msra.mxu0 0
        %828 = vmatprep.subr.bf16.mxu0 0
        %829 = vmatpush1.bf16.msra.mxu0 0
        %830 = vmatprep.subr.bf16.mxu0 0
        %831 = vmatpush1.bf16.msra.mxu0 0
        %832 = vmatprep.subr.bf16.mxu0 0
        %833 = vmatpush1.bf16.msra.mxu0 0
        %834 = vmatprep.subr.bf16.mxu0 0
        %835 = vmatpush1.bf16.msra.mxu0 0
        %836 = vmatprep.mubr.bf16.mxu0 0
        %837 = vmatmul.mubr.bf16.gmra.mrb[0].mxu0 %v754
        %v838 = vpop.f32.mrb[0].mxu0
        %v839 = vadd.f32 %v737, %v838
        %v840 = vpop.f32.mrb[0].mxu0
        %v841 = vpop.f32.mrb[0].mxu0
        %v842 = vadd.f32 %v740, %v841
        %v843 = vpop.f32.mrb[0].mxu0
        %844 = vdwg.mxu0
        %v845 = vld [vmem:[%s4] sm:$0x1]
        %v847 = vlaneseq
        %v848 = vshrl.u32 %v847, 7
        %v849 = vsub.s32 0, %v848
        %v850 = vrot.slane %v845, %v849
        %v852 = vadd.f32 %v839, %v850
        %v853 = vadd.f32 %v842, %v850
        %v854 = vmax.f32 %v852, 0.0
        %v855 = vmax.f32 %v853, 0.0
        %v856 = vld [vmem:[#allocation10] sm:$0xf]
        %v857 = vld [vmem:[#allocation10 + $0x4] sm:$0xf]
        %v858 = vld [vmem:[#allocation10 + $0x8] sm:$0xf]
        %v859 = vld [vmem:[#allocation10 + $0xc] sm:$0xf]
        %v860 = vld [vmem:[#allocation10 + $0x10] sm:$0xf]
        %v861 = vld [vmem:[#allocation10 + $0x14] sm:$0xf]
        %v862 = vld [vmem:[#allocation10 + $0x18] sm:$0xf]
        %v863 = vld [vmem:[#allocation10 + $0x1c] sm:$0xf]
        %v864 = vld [vmem:[#allocation10 + $0x20] sm:$0xf]
        %v865 = vld [vmem:[#allocation10 + $0x24] sm:$0xf]
        %v866 = vld [vmem:[#allocation10 + $0x28] sm:$0xf]
        %v867 = vld [vmem:[#allocation10 + $0x2c] sm:$0xf]
        %v868 = vld [vmem:[#allocation10 + $0x30] sm:$0xf]
        %v869 = vld [vmem:[#allocation10 + $0x34] sm:$0xf]
        %v870 = vld [vmem:[#allocation10 + $0x38] sm:$0xf]
        %v871 = vld [vmem:[#allocation10 + $0x3c] sm:$0xf]
        %v872 = vld [vmem:[%s6] sm:$0x1]
        %v874 = vlaneseq
        %v875 = vshrl.u32 %v874, 7
        %v876 = vsub.s32 0, %v875
        %v877 = vrot.slane %v872, %v876
        %v895 = vunpack.c.l.b16 %v856
        %v896 = vunpack.c.l.b16 %v857
        %v897 = vunpack.c.l.b16 %v858
        %v898 = vunpack.c.l.b16 %v859
        %v899 = vunpack.c.l.b16 %v860
        %v900 = vunpack.c.l.b16 %v861
        %v901 = vunpack.c.l.b16 %v862
        %v902 = vunpack.c.l.b16 %v863
        %v903 = vunpack.c.l.b16 %v864
        %v904 = vunpack.c.l.b16 %v865
        %v905 = vunpack.c.l.b16 %v866
        %v906 = vunpack.c.l.b16 %v867
        %v907 = vunpack.c.l.b16 %v868
        %v908 = vunpack.c.l.b16 %v869
        %v909 = vunpack.c.l.b16 %v870
        %v910 = vunpack.c.l.b16 %v871
        %v911 = vpack.c.b16 %v896, %v895
        %v912 = vpack.c.b16 %v898, %v897
        %v913 = vpack.c.b16 %v900, %v899
        %v914 = vpack.c.b16 %v902, %v901
        %v915 = vpack.c.b16 %v904, %v903
        %v916 = vpack.c.b16 %v906, %v905
        %v917 = vpack.c.b16 %v908, %v907
        %v918 = vpack.c.b16 %v910, %v909
        %927 = vmatprep.subr.bf16.mxu0 0
        %928 = vmatpush1.bf16.msra.mxu0 %v911
        %929 = vmatprep.subr.bf16.mxu0 0
        %930 = vmatpush1.bf16.msra.mxu0 %v912
        %931 = vmatprep.subr.bf16.mxu0 0
        %932 = vmatpush1.bf16.msra.mxu0 %v913
        %933 = vmatprep.subr.bf16.mxu0 0
        %934 = vmatpush1.bf16.msra.mxu0 %v914
        %935 = vmatprep.subr.bf16.mxu0 0
        %936 = vmatpush1.bf16.msra.mxu0 %v915
        %937 = vmatprep.subr.bf16.mxu0 0
        %938 = vmatpush1.bf16.msra.mxu0 %v916
        %939 = vmatprep.subr.bf16.mxu0 0
        %940 = vmatpush1.bf16.msra.mxu0 %v917
        %941 = vmatprep.subr.bf16.mxu0 0
        %942 = vmatpush1.bf16.msra.mxu0 %v918
        %943 = vmatprep.subr.bf16.mxu0 0
        %944 = vmatpush1.bf16.msra.mxu0 0
        %945 = vmatprep.subr.bf16.mxu0 0
        %946 = vmatpush1.bf16.msra.mxu0 0
        %947 = vmatprep.subr.bf16.mxu0 0
        %948 = vmatpush1.bf16.msra.mxu0 0
        %949 = vmatprep.subr.bf16.mxu0 0
        %950 = vmatpush1.bf16.msra.mxu0 0
        %951 = vmatprep.subr.bf16.mxu0 0
        %952 = vmatpush1.bf16.msra.mxu0 0
        %953 = vmatprep.subr.bf16.mxu0 0
        %954 = vmatpush1.bf16.msra.mxu0 0
        %955 = vmatprep.subr.bf16.mxu0 0
        %956 = vmatpush1.bf16.msra.mxu0 0
        %957 = vmatprep.subr.bf16.mxu0 0
        %958 = vmatpush1.bf16.msra.mxu0 0
        %959 = vmatprep.mubr.bf16.mxu0 0
        %960 = vmatmul.mubr.bf16.gmra.mrb[0].mxu0 %v376
        %v961 = vpop.f32.mrb[0].mxu0
        %v962 = vadd.f32 %v877, %v961
        %v963 = vpop.f32.mrb[0].mxu0
        %v964 = vpop.f32.mrb[0].mxu0
        %v965 = vadd.f32 %v877, %v964
        %v966 = vpop.f32.mrb[0].mxu0
        %967 = vdwg.mxu0
        %v968 = vadd.f32 %v854, %v962
        %v969 = vadd.f32 %v855, %v965
        %v970 = vmax.f32 %v968, 0.0
        %v971 = vmax.f32 %v969, 0.0
        %v972 = vpack.c.bf16 %v971, %v970
        %v974 = vunpack.c.l.b16 %v972
        %v975 = vunpack.c.h.b16 %v972
        %v976 = vpack.c.b16 %v974, %v974
        %v977 = vpack.c.b16 %v975, %v975
        %980 = vst [vmem:[%s358] sm:$0xf] %v976
        %981 = vst [vmem:[%s358 + $0x4] sm:$0xf] %v977
        %s982 = sadd.s32 %s31, 1
        %p983 = scmp.lt.s32.totalorder %s982, 1
        // Predicated region
        $region69: #{tpu_custom_call.1} parent=47 // pred_check
          %p984 = pneg %p983
        $region70: #{tpu_custom_call.1} parent=47 // pred_check_branch
          %986 = sbr.rel (%p984) target = $region72
        $region71: #{tpu_custom_call.1} parent=47 // pred_region
          %v987 = vld [vmem:[#allocation2 + $0x8] sm:$0xff]
          %v988 = vld [vmem:[#allocation3 + $0x8] sm:$0xff]
          %989 = vst [vmem:[#allocation2] sm:$0xff] %v987
          %990 = vst [vmem:[#allocation3] sm:$0xff] %v988
        $region72: #{tpu_custom_call.1} parent=47 // pred_fallthru
          _
        %s991 = sand.u32 %s202, 1
        %s992 = scalar_lea.sflag [#allocation6], %s991
        %s993 = sand.u32 %s202, 1
        %s994 = smul.addr %s993, 8
        %s995 = scalar_lea.vmem [#allocation12], %s994
        // Predicated region
        $region73: #{tpu_custom_call.1} parent=47 // pred_check
          %p996 = pneg %p212
        $region74: #{tpu_custom_call.1} parent=47 // pred_check_branch
          %998 = sbr.rel (%p996) target = $region76
        $region75: #{tpu_custom_call.1} parent=47 // pred_region
          %s999 = smul.u32 2, %s31
          %s1001 = ssub.s32 128, 128
          %1002 = vsyncadd %s992, %s1001
          %s1003 = smul.addr %s30, 2
          %s1004 = sadd.s32 %s999, %s1003
          %s1005 = smul.addr %s1004, 64
          %s1006 = scalar_lea.hbm %s7, %s1005
          %s1007 = sshll.u32 %s995, 4
          %s1008 = int_to_ptr.vmem [resolvable:$true] %s1007
          %1013 = dma.vmem_to_hbm [thread:$0]  %s1008, 128, %s1006, %s992, 64, 64, 4
        $region76: #{tpu_custom_call.1} parent=47 // pred_fallthru
          _
      $region48: #{tpu_custom_call.1} parent=5 // pred_fallthru
        _
      %p1014 = scmp.le.s32.totalorder 2, %s21
      // Predicated region
      $region77: #{tpu_custom_call.1} parent=5 // pred_check
        %p1015 = pneg %p1014
      $region78: #{tpu_custom_call.1} parent=5 // pred_check_branch
        %1017 = sbr.rel (%p1015) target = $region80
      $region79: #{tpu_custom_call.1} parent=5 // pred_region
        %s1018 = ssub.s32 %s21, 2
        // Predicated region
        $region81: #{tpu_custom_call.1} parent=79 // pred_check
          %p1019 = pneg %p218
        $region82: #{tpu_custom_call.1} parent=79 // pred_check_branch
          %1021 = sbr.rel (%p1019) target = $region84
        $region83: #{tpu_custom_call.1} parent=79 // pred_region
          %s1022 = sand.u32 %s203, 1
          %s1023 = scalar_lea.sflag [#allocation6], %s1022
          %s1024 = sand.u32 %s203, 1
          %s1025 = smul.addr %s1024, 8
          %s1026 = scalar_lea.vmem [#allocation12], %s1025
          %1027 = dma.done %s1023, 128
        $region84: #{tpu_custom_call.1} parent=79 // pred_fallthru
          _
      $region80: #{tpu_custom_call.1} parent=5 // pred_fallthru
        _
    $region6: #{tpu_custom_call.1} parent=1 // loop_footer
      %s25 = sadd.s32 1, %s21
    $region7: #{tpu_custom_call.1} parent=1 // loop_footer_branch
      %20 = sbr.rel target = $region3
    $region8: #{tpu_custom_call.1} parent=1 // loop_exit
      _
    %1028 = vsyncpa [#allocation5], 1
    %s1029 = scalar_lea.sflag [#allocation5], 1
    %1030 = vsyncpa %s1029, 1
    %1031 = vsyncpa [#allocation8], 1
    %1032 = vsyncpa [#allocation11], 1
    %1033 = vsyncpa [#allocation6], 1
    %s1034 = scalar_lea.sflag [#allocation6], 1
    %1035 = vsyncpa %s1034, 1

</llo_original>
